<compile_context>
chip_gen: v5e
topology: v5e:2x2
jax: 0.10.0
libtpu: 0.0.40
codegen_flags: <defaults>
</compile_context>

<pallas_src>
import functools

import jax
import jax.numpy as jnp
from jax.experimental import pallas as pl
from jax.experimental.pallas import tpu as pltpu


def _simple_kernel(x_ref, y_ref, w1_ref, b1_ref, w2_ref, b2_ref, out_ref,
                   *, bx, by, s):
    """x_ref: (Bx*S, Din); y_ref: (By*S, Din); weights pre-transposed (in, out).

    out_ref: (S, Dout) = max_b(lin2(lin1(x_b))) + max_b(lin2(lin1(y_b))).
    """
    # In-kernel algebraic fusion of the two Linears (no nonlinearity between):
    #   lin2(lin1(v)) = v @ (w1 @ w2) + (b1 @ w2 + b2)
    wf = jnp.dot(w1_ref[...], w2_ref[...],
                 preferred_element_type=jnp.float32)                 # (Din, Dout)
    # Bias is constant over the reduced axis -> hoisted out of both maxes and
    # pre-doubled so the epilogue is a single add.
    bf2 = 2.0 * (jnp.dot(b1_ref[...], w2_ref[...],
                         preferred_element_type=jnp.float32)
                 + b2_ref[...])                                      # (1, Dout)

    # One long MXU stream per group instead of 9 short matmuls.
    ox = jnp.dot(x_ref[...], wf, preferred_element_type=jnp.float32)  # (Bx*S, Dout)
    oy = jnp.dot(y_ref[...], wf, preferred_element_type=jnp.float32)  # (By*S, Dout)

    # Group max over static S-row slices (VPU maxes; any sublane shift from the
    # 50-row, non-8-aligned slices rides the otherwise-idle XLU).
    max_x = ox[0:s, :]
    for b in range(1, bx):
        max_x = jnp.maximum(max_x, ox[b * s:(b + 1) * s, :])
    max_y = oy[0:s, :]
    for b in range(1, by):
        max_y = jnp.maximum(max_y, oy[b * s:(b + 1) * s, :])

    out_ref[...] = max_x + max_y + bf2


@jax.jit
def simple_forward(x, y, w1, b1, w2, b2):
    """x: (Bx, S, Din), y: (By, S, Din); weights pre-transposed to (in, out)."""
    Bx, S, Din = x.shape
    By = y.shape[0]
    H = w1.shape[1]
    Dout = w2.shape[1]
    assert Bx >= 1 and By >= 1, "empty group would change max semantics"

    # Free row-major reshapes (layout-preserving, no HBM copy): one matmul per
    # group inside the kernel instead of one per batch slice.
    x2 = x.reshape(Bx * S, Din)
    y2 = y.reshape(By * S, Din)

    vmem = pl.BlockSpec(memory_space=pltpu.MemorySpace.VMEM)
    flops = (2 * (Bx + By) * S * Din * Dout    # activation matmuls
             + 2 * Din * H * Dout              # wf = w1 @ w2
             + 2 * H * Dout)                   # bf = b1 @ w2
    bytes_accessed = 4 * (x2.size + y2.size + w1.size + b1.size
                          + w2.size + b2.size + S * Dout)

    kernel = functools.partial(_simple_kernel, bx=Bx, by=By, s=S)

    return pl.pallas_call(
        kernel,
        out_shape=jax.ShapeDtypeStruct((S, Dout), jnp.float32),
        in_specs=[vmem, vmem, vmem, vmem, vmem, vmem],
        out_specs=vmem,
        cost_estimate=pl.CostEstimate(
            flops=flops, transcendentals=0, bytes_accessed=bytes_accessed),
    )(x2, y2, w1, b1, w2, b2)


def _reference(x, y, w1, b1, w2, b2):
    """Un-fused reference matching the PyTorch module exactly."""
    def mlp(v):
        return (v @ w1 + b1[0]) @ w2 + b2[0]
    return jnp.max(mlp(x), axis=0) + jnp.max(mlp(y), axis=0)


if __name__ == "__main__":
    key = jax.random.PRNGKey(0)
    k_x, k_y, k_w1, k_b1, k_w2, k_b2 = jax.random.split(key, 6)

    # Shapes implied by the module / its usage: x=(4,50,10), y=(5,50,10)
    input_dim, hid_dim, out_dim = 10, 32, 16
    S = 50
    x = jax.random.normal(k_x, (4, S, input_dim), dtype=jnp.float32)
    y = jax.random.normal(k_y, (5, S, input_dim), dtype=jnp.float32)

    # PyTorch Linear default init U(-1/sqrt(fan_in), 1/sqrt(fan_in)),
    # weights stored pre-transposed as (in, out).
    lim1 = 1.0 / (input_dim ** 0.5)
    lim2 = 1.0 / (hid_dim ** 0.5)
    w1 = jax.random.uniform(k_w1, (input_dim, hid_dim), minval=-lim1, maxval=lim1,
                            dtype=jnp.float32)
    b1 = jax.random.uniform(k_b1, (1, hid_dim), minval=-lim1, maxval=lim1,
                            dtype=jnp.float32)
    w2 = jax.random.uniform(k_w2, (hid_dim, out_dim), minval=-lim2, maxval=lim2,
                            dtype=jnp.float32)
    b2 = jax.random.uniform(k_b2, (1, out_dim), minval=-lim2, maxval=lim2,
                            dtype=jnp.float32)

    out = simple_forward(x, y, w1, b1, w2, b2)
    out = jax.block_until_ready(out)

    ref = _reference(x, y, w1, b1, w2, b2)
    assert out.shape == (S, out_dim)
    # Fused-weight path differs from the two-matmul reference only by f32
    # rounding (association order); well within tolerance.
    assert jnp.allclose(out, ref, atol=1e-4, rtol=1e-4)

    print("KERNEL_OK")
</pallas_src>

<mosaic_0001>
module attributes {stable_mosaic.version = 11 : i64} {
  func.func @_simple_kernel(%arg0: memref<200x10xf32, #tpu.memory_space<vmem>>, %arg1: memref<250x10xf32, #tpu.memory_space<vmem>>, %arg2: memref<10x32xf32, #tpu.memory_space<vmem>>, %arg3: memref<1x32xf32, #tpu.memory_space<vmem>>, %arg4: memref<32x16xf32, #tpu.memory_space<vmem>>, %arg5: memref<1x16xf32, #tpu.memory_space<vmem>>, %arg6: memref<50x16xf32, #tpu.memory_space<vmem>>) attributes {dimension_semantics = [], scalar_prefetch = 0 : i64, scratch_operands = 0 : i64, tpu.core_type = #tpu.core_type<tc>} {
    %c0 = arith.constant 0 : index
    %c0_0 = arith.constant 0 : index
    %0 = vector.load %arg2[%c0, %c0_0] : memref<10x32xf32, #tpu.memory_space<vmem>>, vector<10x32xf32>
    %c0_1 = arith.constant 0 : index
    %c0_2 = arith.constant 0 : index
    %1 = vector.load %arg4[%c0_1, %c0_2] : memref<32x16xf32, #tpu.memory_space<vmem>>, vector<32x16xf32>
    %cst = arith.constant dense<0.000000e+00> : vector<10x16xf32>
    %2 = tpu.matmul %0, %1, %cst {dimension_numbers = #tpu.dot_dimension_numbers<[1], [0], [0], [1], [0, 0, 1, 1], [], []>} : vector<10x32xf32>, vector<32x16xf32>, vector<10x16xf32> -> vector<10x16xf32>
    %c0_3 = arith.constant 0 : index
    %c0_4 = arith.constant 0 : index
    %3 = vector.load %arg3[%c0_3, %c0_4] : memref<1x32xf32, #tpu.memory_space<vmem>>, vector<1x32xf32>
    %c0_5 = arith.constant 0 : index
    %c0_6 = arith.constant 0 : index
    %4 = vector.load %arg4[%c0_5, %c0_6] : memref<32x16xf32, #tpu.memory_space<vmem>>, vector<32x16xf32>
    %cst_7 = arith.constant dense<0.000000e+00> : vector<1x16xf32>
    %5 = tpu.matmul %3, %4, %cst_7 {dimension_numbers = #tpu.dot_dimension_numbers<[1], [0], [0], [1], [0, 0, 1, 1], [], []>} : vector<1x32xf32>, vector<32x16xf32>, vector<1x16xf32> -> vector<1x16xf32>
    %c0_8 = arith.constant 0 : index
    %c0_9 = arith.constant 0 : index
    %6 = vector.load %arg5[%c0_8, %c0_9] : memref<1x16xf32, #tpu.memory_space<vmem>>, vector<1x16xf32>
    %7 = arith.addf %5, %6 : vector<1x16xf32>
    %cst_10 = arith.constant 2.000000e+00 : f32
    %8 = vector.broadcast %cst_10 : f32 to vector<1x16xf32>
    %9 = arith.mulf %8, %7 : vector<1x16xf32>
    %c0_11 = arith.constant 0 : index
    %c0_12 = arith.constant 0 : index
    %10 = vector.load %arg0[%c0_11, %c0_12] : memref<200x10xf32, #tpu.memory_space<vmem>>, vector<200x10xf32>
    %cst_13 = arith.constant dense<0.000000e+00> : vector<200x16xf32>
    %11 = tpu.matmul %10, %2, %cst_13 {dimension_numbers = #tpu.dot_dimension_numbers<[1], [0], [0], [1], [0, 0, 1, 1], [], []>} : vector<200x10xf32>, vector<10x16xf32>, vector<200x16xf32> -> vector<200x16xf32>
    %c0_14 = arith.constant 0 : index
    %c0_15 = arith.constant 0 : index
    %12 = vector.load %arg1[%c0_14, %c0_15] : memref<250x10xf32, #tpu.memory_space<vmem>>, vector<250x10xf32>
    %cst_16 = arith.constant dense<0.000000e+00> : vector<250x16xf32>
    %13 = tpu.matmul %12, %2, %cst_16 {dimension_numbers = #tpu.dot_dimension_numbers<[1], [0], [0], [1], [0, 0, 1, 1], [], []>} : vector<250x10xf32>, vector<10x16xf32>, vector<250x16xf32> -> vector<250x16xf32>
    %14 = vector.extract_strided_slice %11 {offsets = [0, 0], sizes = [50, 16], strides = [1, 1]} : vector<200x16xf32> to vector<50x16xf32>
    %15 = vector.extract_strided_slice %11 {offsets = [50, 0], sizes = [50, 16], strides = [1, 1]} : vector<200x16xf32> to vector<50x16xf32>
    %16 = arith.maximumf %14, %15 : vector<50x16xf32>
    %17 = vector.extract_strided_slice %11 {offsets = [100, 0], sizes = [50, 16], strides = [1, 1]} : vector<200x16xf32> to vector<50x16xf32>
    %18 = arith.maximumf %16, %17 : vector<50x16xf32>
    %19 = vector.extract_strided_slice %11 {offsets = [150, 0], sizes = [50, 16], strides = [1, 1]} : vector<200x16xf32> to vector<50x16xf32>
    %20 = arith.maximumf %18, %19 : vector<50x16xf32>
    %21 = vector.extract_strided_slice %13 {offsets = [0, 0], sizes = [50, 16], strides = [1, 1]} : vector<250x16xf32> to vector<50x16xf32>
    %22 = vector.extract_strided_slice %13 {offsets = [50, 0], sizes = [50, 16], strides = [1, 1]} : vector<250x16xf32> to vector<50x16xf32>
    %23 = arith.maximumf %21, %22 : vector<50x16xf32>
    %24 = vector.extract_strided_slice %13 {offsets = [100, 0], sizes = [50, 16], strides = [1, 1]} : vector<250x16xf32> to vector<50x16xf32>
    %25 = arith.maximumf %23, %24 : vector<50x16xf32>
    %26 = vector.extract_strided_slice %13 {offsets = [150, 0], sizes = [50, 16], strides = [1, 1]} : vector<250x16xf32> to vector<50x16xf32>
    %27 = arith.maximumf %25, %26 : vector<50x16xf32>
    %28 = vector.extract_strided_slice %13 {offsets = [200, 0], sizes = [50, 16], strides = [1, 1]} : vector<250x16xf32> to vector<50x16xf32>
    %29 = arith.maximumf %27, %28 : vector<50x16xf32>
    %30 = arith.addf %20, %29 : vector<50x16xf32>
    %31 = vector.broadcast %9 : vector<1x16xf32> to vector<50x16xf32>
    %32 = arith.addf %30, %31 : vector<50x16xf32>
    %c0_17 = arith.constant 0 : index
    %c0_18 = arith.constant 0 : index
    %33 = vector.load %arg6[%c0_17, %c0_18] : memref<50x16xf32, #tpu.memory_space<vmem>>, vector<50x16xf32>
    tpu.vector_store %arg6[%c0_17, %c0_18], %32 {strides = array<i32>} : memref<50x16xf32, #tpu.memory_space<vmem>>, vector<50x16xf32>,
    return
  }
}

</mosaic_0001>

<llo_original>
// kernel: simple_forward.1
$region0: #{simple_forward.1}
  #allocation0 [shape = 'u32[]', space=smem, size = 0x4, offset = 0x4, fixed_abs, tag = 'smem constant byte address 0x4 - core index']
  #allocation1 [shape = 'u32[72,128]{1,0:T(1,128)}', space=vmem, size = 0x9000, scoped, tag = 'internal scratch']
  %s0 = inlined_call_operand.vmem [shape: f32[200,10], index: 0, kind: input, shape index: {}]
  %s1 = inlined_call_operand.vmem [shape: f32[250,10], index: 1, kind: input, shape index: {}]
  %s2 = inlined_call_operand.vmem [shape: f32[10,32], index: 2, kind: input, shape index: {}]
  %s3 = inlined_call_operand.vmem [shape: f32[1,32], index: 3, kind: input, shape index: {}]
  %s4 = inlined_call_operand.vmem [shape: f32[32,16], index: 4, kind: input, shape index: {}]
  %s5 = inlined_call_operand.vmem [shape: f32[1,16], index: 5, kind: input, shape index: {}]
  %s6 = inlined_call_operand.vmem [shape: f32[50,16], index: 6, kind: output, shape index: {}]
  %s7 = sld [smem:[#allocation0]]
  $region34: #{simple_forward.1} parent=0
    _
  %s9 = ssub.s32 1, %s7
  %s10 = scalar_select 0, %s9, %s7
  // Predicated region
  $region2: #{simple_forward.1} parent=0 // pred_check
    _
  $region3: #{simple_forward.1} parent=0 // pred_check_branch
    %12 = sbr.rel (0) target = $region5
  $region4: #{simple_forward.1} parent=0 // pred_region
    _
  $region5: #{simple_forward.1} parent=0 // pred_fallthru
    _
  // Predicated region
  $region6: #{simple_forward.1} parent=0 // pred_check
    _
  $region7: #{simple_forward.1} parent=0 // pred_check_branch
    %14 = sbr.rel (0) target = $region9
  $region8: #{simple_forward.1} parent=0 // pred_region
    _
  $region9: #{simple_forward.1} parent=0 // pred_fallthru
    _
  // Predicated region
  $region10: #{simple_forward.1} parent=0 // pred_check
    _
  $region11: #{simple_forward.1} parent=0 // pred_check_branch
    %16 = sbr.rel (0) target = $region13
  $region12: #{simple_forward.1} parent=0 // pred_region
    _
  $region13: #{simple_forward.1} parent=0 // pred_fallthru
    _
  // Predicated region
  $region14: #{simple_forward.1} parent=0 // pred_check
    _
  $region15: #{simple_forward.1} parent=0 // pred_check_branch
    %18 = sbr.rel (0) target = $region17
  $region16: #{simple_forward.1} parent=0 // pred_region
    _
  $region17: #{simple_forward.1} parent=0 // pred_fallthru
    _
  // Predicated region
  $region18: #{simple_forward.1} parent=0 // pred_check
    _
  $region19: #{simple_forward.1} parent=0 // pred_check_branch
    %20 = sbr.rel (0) target = $region21
  $region20: #{simple_forward.1} parent=0 // pred_region
    _
  $region21: #{simple_forward.1} parent=0 // pred_fallthru
    _
  // Predicated region
  $region22: #{simple_forward.1} parent=0 // pred_check
    _
  $region23: #{simple_forward.1} parent=0 // pred_check_branch
    %22 = sbr.rel (0) target = $region25
  $region24: #{simple_forward.1} parent=0 // pred_region
    _
  $region25: #{simple_forward.1} parent=0 // pred_fallthru
    _
  %v23 = vld [vmem:[%s2] sm:$0xff]
  %v24 = vld [vmem:[%s2 + $0x8] sm:$0x3]
  %v25 = vld [vmem:[%s4] sm:$0xff]
  %v26 = vld [vmem:[%s4 + $0x8] sm:$0xff]
  %v27 = vld [vmem:[%s4 + $0x10] sm:$0xff]
  %v28 = vld [vmem:[%s4 + $0x18] sm:$0xff]
  %vm29 = vcmask 261120
  %v31 = vsel %vm29, %v23, 0
  %v34 = vsel %vm29, %v24, 0
  %36 = vmatpush.msra.mxu0 0.0
  %37 = vmatpush.msra.mxu0 0.0
  %38 = vmatpush.msra.mxu0 0.0
  %39 = vmatpush.msra.mxu0 0.0
  %40 = vmatpush.msra.mxu0 0.0
  %41 = vmatpush.msra.mxu0 0.0
  %42 = vmatpush.msra.mxu0 0.0
  %43 = vmatpush.msra.mxu0 0.0
  %44 = vmatpush.msra.mxu0 0.0
  %45 = vmatpush.msra.mxu0 0.0
  %46 = vmatpush.msra.mxu0 0.0
  %47 = vmatpush.msra.mxu0 0.0
  %48 = vmatpush.msra.mxu0 %v28
  %49 = vmatpush.msra.mxu0 %v27
  %50 = vmatpush.msra.mxu0 %v26
  %51 = vmatpush.msra.mxu0 %v25
  %52 = vmatmul.f32.gmra.mxu0 %v31
  %v53 = vpop.f32.mrf.mxu0
  %v54 = vadd.f32 0.0, %v53
  %55 = vmatmul.f32.gmra.mxu0 %v34
  %v56 = vpop.f32.mrf.mxu0
  %v57 = vadd.f32 0.0, %v56
  %58 = vdwg.mxu0
  %v59 = vld [vmem:[%s3] sm:$0x1]
  %v60 = vld [vmem:[%s5] sm:$0x1]
  %v62 = vsel %vm29, %v59, 0
  %64 = vmatpush.msra.mxu0 0.0
  %65 = vmatpush.msra.mxu0 0.0
  %66 = vmatpush.msra.mxu0 0.0
  %67 = vmatpush.msra.mxu0 0.0
  %68 = vmatpush.msra.mxu0 0.0
  %69 = vmatpush.msra.mxu0 0.0
  %70 = vmatpush.msra.mxu0 0.0
  %71 = vmatpush.msra.mxu0 0.0
  %72 = vmatpush.msra.mxu0 0.0
  %73 = vmatpush.msra.mxu0 0.0
  %74 = vmatpush.msra.mxu0 0.0
  %75 = vmatpush.msra.mxu0 0.0
  %76 = vmatpush.msra.mxu0 %v28
  %77 = vmatpush.msra.mxu0 %v27
  %78 = vmatpush.msra.mxu0 %v26
  %79 = vmatpush.msra.mxu0 %v25
  %80 = vmatmul.f32.gmra.mxu0 %v62
  %v81 = vpop.f32.mrf.mxu0
  %v82 = vadd.f32 %v60, %v81
  %83 = vdwg.mxu0
  %v84 = vmul.f32 %v82, 2.0
  %v85 = vld [vmem:[%s0] sm:$0xff]
  %v86 = vld [vmem:[%s0 + $0x8] sm:$0xff]
  %v87 = vld [vmem:[%s0 + $0x10] sm:$0xff]
  %v88 = vld [vmem:[%s0 + $0x18] sm:$0xff]
  %v89 = vld [vmem:[%s0 + $0x20] sm:$0xff]
  %v90 = vld [vmem:[%s0 + $0x28] sm:$0xff]
  %v91 = vld [vmem:[%s0 + $0x30] sm:$0xff]
  %v92 = vld [vmem:[%s0 + $0x38] sm:$0xff]
  %v93 = vld [vmem:[%s0 + $0x40] sm:$0xff]
  %v94 = vld [vmem:[%s0 + $0x48] sm:$0xff]
  %v95 = vld [vmem:[%s0 + $0x50] sm:$0xff]
  %v96 = vld [vmem:[%s0 + $0x58] sm:$0xff]
  %v97 = vld [vmem:[%s0 + $0x60] sm:$0xff]
  %v98 = vld [vmem:[%s0 + $0x68] sm:$0xff]
  %v99 = vld [vmem:[%s0 + $0x70] sm:$0xff]
  %v100 = vld [vmem:[%s0 + $0x78] sm:$0xff]
  %v101 = vld [vmem:[%s0 + $0x80] sm:$0xff]
  %v102 = vld [vmem:[%s0 + $0x88] sm:$0xff]
  %v103 = vld [vmem:[%s0 + $0x90] sm:$0xff]
  %v104 = vld [vmem:[%s0 + $0x98] sm:$0xff]
  %v105 = vld [vmem:[%s0 + $0xa0] sm:$0xff]
  %v106 = vld [vmem:[%s0 + $0xa8] sm:$0xff]
  %v107 = vld [vmem:[%s0 + $0xb0] sm:$0xff]
  %v108 = vld [vmem:[%s0 + $0xb8] sm:$0xff]
  %v109 = vld [vmem:[%s0 + $0xc0] sm:$0xff]
  %vm110 = vcmask 80896
  %v112 = vsel %vm110, %v85, 0
  %v115 = vsel %vm110, %v86, 0
  %v118 = vsel %vm110, %v87, 0
  %v121 = vsel %vm110, %v88, 0
  %v124 = vsel %vm110, %v89, 0
  %v127 = vsel %vm110, %v90, 0
  %v130 = vsel %vm110, %v91, 0
  %v133 = vsel %vm110, %v92, 0
  %v136 = vsel %vm110, %v93, 0
  %v139 = vsel %vm110, %v94, 0
  %v142 = vsel %vm110, %v95, 0
  %v145 = vsel %vm110, %v96, 0
  %v148 = vsel %vm110, %v97, 0
  %v151 = vsel %vm110, %v98, 0
  %v154 = vsel %vm110, %v99, 0
  %v157 = vsel %vm110, %v100, 0
  %v160 = vsel %vm110, %v101, 0
  %v163 = vsel %vm110, %v102, 0
  %v166 = vsel %vm110, %v103, 0
  %v169 = vsel %vm110, %v104, 0
  %v172 = vsel %vm110, %v105, 0
  %v175 = vsel %vm110, %v106, 0
  %v178 = vsel %vm110, %v107, 0
  %v181 = vsel %vm110, %v108, 0
  %v184 = vsel %vm110, %v109, 0
  %vm186 = vcmask 1041408
  %v188 = vsel %vm186, %v57, 0
  %190 = vmatpush.msra.mxu0 0.0
  %191 = vmatpush.msra.mxu0 0.0
  %192 = vmatpush.msra.mxu0 0.0
  %193 = vmatpush.msra.mxu0 0.0
  %194 = vmatpush.msra.mxu0 0.0
  %195 = vmatpush.msra.mxu0 0.0
  %196 = vmatpush.msra.mxu0 0.0
  %197 = vmatpush.msra.mxu0 0.0
  %198 = vmatpush.msra.mxu0 0.0
  %199 = vmatpush.msra.mxu0 0.0
  %200 = vmatpush.msra.mxu0 0.0
  %201 = vmatpush.msra.mxu0 0.0
  %202 = vmatpush.msra.mxu0 0.0
  %203 = vmatpush.msra.mxu0 0.0
  %204 = vmatpush.msra.mxu0 %v188
  %205 = vmatpush.msra.mxu0 %v54
  %206 = vmatmul.f32.gmra.mxu0 %v112
  %v207 = vpop.f32.mrf.mxu0
  %v208 = vadd.f32 0.0, %v207
  %209 = vmatmul.f32.gmra.mxu0 %v115
  %v210 = vpop.f32.mrf.mxu0
  %v211 = vadd.f32 0.0, %v210
  %212 = vmatmul.f32.gmra.mxu0 %v118
  %v213 = vpop.f32.mrf.mxu0
  %v214 = vadd.f32 0.0, %v213
  %215 = vmatmul.f32.gmra.mxu0 %v121
  %v216 = vpop.f32.mrf.mxu0
  %v217 = vadd.f32 0.0, %v216
  %218 = vmatmul.f32.gmra.mxu0 %v124
  %v219 = vpop.f32.mrf.mxu0
  %v220 = vadd.f32 0.0, %v219
  %221 = vmatmul.f32.gmra.mxu0 %v127
  %v222 = vpop.f32.mrf.mxu0
  %v223 = vadd.f32 0.0, %v222
  %224 = vmatmul.f32.gmra.mxu0 %v130
  %v225 = vpop.f32.mrf.mxu0
  %v226 = vadd.f32 0.0, %v225
  %227 = vmatmul.f32.gmra.mxu0 %v133
  %v228 = vpop.f32.mrf.mxu0
  %v229 = vadd.f32 0.0, %v228
  %230 = vmatmul.f32.gmra.mxu0 %v136
  %v231 = vpop.f32.mrf.mxu0
  %v232 = vadd.f32 0.0, %v231
  %233 = vmatmul.f32.gmra.mxu0 %v139
  %v234 = vpop.f32.mrf.mxu0
  %v235 = vadd.f32 0.0, %v234
  %236 = vmatmul.f32.gmra.mxu0 %v142
  %v237 = vpop.f32.mrf.mxu0
  %v238 = vadd.f32 0.0, %v237
  %239 = vmatmul.f32.gmra.mxu0 %v145
  %v240 = vpop.f32.mrf.mxu0
  %v241 = vadd.f32 0.0, %v240
  %242 = vmatmul.f32.gmra.mxu0 %v148
  %v243 = vpop.f32.mrf.mxu0
  %v244 = vadd.f32 0.0, %v243
  %245 = vmatmul.f32.gmra.mxu0 %v151
  %v246 = vpop.f32.mrf.mxu0
  %v247 = vadd.f32 0.0, %v246
  %248 = vmatmul.f32.gmra.mxu0 %v154
  %v249 = vpop.f32.mrf.mxu0
  %v250 = vadd.f32 0.0, %v249
  %251 = vmatmul.f32.gmra.mxu0 %v157
  %v252 = vpop.f32.mrf.mxu0
  %v253 = vadd.f32 0.0, %v252
  %254 = vmatmul.f32.gmra.mxu0 %v160
  %v255 = vpop.f32.mrf.mxu0
  %v256 = vadd.f32 0.0, %v255
  %257 = vmatmul.f32.gmra.mxu0 %v163
  %v258 = vpop.f32.mrf.mxu0
  %v259 = vadd.f32 0.0, %v258
  %260 = vmatmul.f32.gmra.mxu0 %v166
  %v261 = vpop.f32.mrf.mxu0
  %v262 = vadd.f32 0.0, %v261
  %263 = vmatmul.f32.gmra.mxu0 %v169
  %v264 = vpop.f32.mrf.mxu0
  %v265 = vadd.f32 0.0, %v264
  %266 = vmatmul.f32.gmra.mxu0 %v172
  %v267 = vpop.f32.mrf.mxu0
  %v268 = vadd.f32 0.0, %v267
  %269 = vmatmul.f32.gmra.mxu0 %v175
  %v270 = vpop.f32.mrf.mxu0
  %v271 = vadd.f32 0.0, %v270
  %272 = vmatmul.f32.gmra.mxu0 %v178
  %v273 = vpop.f32.mrf.mxu0
  %v274 = vadd.f32 0.0, %v273
  %275 = vmatmul.f32.gmra.mxu0 %v181
  %v276 = vpop.f32.mrf.mxu0
  %v277 = vadd.f32 0.0, %v276
  %278 = vmatmul.f32.gmra.mxu0 %v184
  %v279 = vpop.f32.mrf.mxu0
  %v280 = vadd.f32 0.0, %v279
  %281 = vdwg.mxu0
  %v282 = vld [vmem:[%s1] sm:$0xff]
  %v283 = vld [vmem:[%s1 + $0x8] sm:$0xff]
  %v284 = vld [vmem:[%s1 + $0x10] sm:$0xff]
  %v285 = vld [vmem:[%s1 + $0x18] sm:$0xff]
  %v286 = vld [vmem:[%s1 + $0x20] sm:$0xff]
  %v287 = vld [vmem:[%s1 + $0x28] sm:$0xff]
  %v288 = vld [vmem:[%s1 + $0x30] sm:$0xff]
  %v289 = vld [vmem:[%s1 + $0x38] sm:$0xff]
  %v290 = vld [vmem:[%s1 + $0x40] sm:$0xff]
  %v291 = vld [vmem:[%s1 + $0x48] sm:$0xff]
  %v292 = vld [vmem:[%s1 + $0x50] sm:$0xff]
  %v293 = vld [vmem:[%s1 + $0x58] sm:$0xff]
  %v294 = vld [vmem:[%s1 + $0x60] sm:$0xff]
  %v295 = vld [vmem:[%s1 + $0x68] sm:$0xff]
  %v296 = vld [vmem:[%s1 + $0x70] sm:$0xff]
  %v297 = vld [vmem:[%s1 + $0x78] sm:$0xff]
  %v298 = vld [vmem:[%s1 + $0x80] sm:$0xff]
  %v299 = vld [vmem:[%s1 + $0x88] sm:$0xff]
  %v300 = vld [vmem:[%s1 + $0x90] sm:$0xff]
  %v301 = vld [vmem:[%s1 + $0x98] sm:$0xff]
  %v302 = vld [vmem:[%s1 + $0xa0] sm:$0xff]
  %v303 = vld [vmem:[%s1 + $0xa8] sm:$0xff]
  %v304 = vld [vmem:[%s1 + $0xb0] sm:$0xff]
  %v305 = vld [vmem:[%s1 + $0xb8] sm:$0xff]
  %v306 = vld [vmem:[%s1 + $0xc0] sm:$0xff]
  %v307 = vld [vmem:[%s1 + $0xc8] sm:$0xff]
  %v308 = vld [vmem:[%s1 + $0xd0] sm:$0xff]
  %v309 = vld [vmem:[%s1 + $0xd8] sm:$0xff]
  %v310 = vld [vmem:[%s1 + $0xe0] sm:$0xff]
  %v311 = vld [vmem:[%s1 + $0xe8] sm:$0xff]
  %v312 = vld [vmem:[%s1 + $0xf0] sm:$0xff]
  %v313 = vld [vmem:[%s1 + $0xf8] sm:$0x3]
  %v315 = vsel %vm110, %v282, 0
  %v318 = vsel %vm110, %v283, 0
  %v321 = vsel %vm110, %v284, 0
  %v324 = vsel %vm110, %v285, 0
  %v327 = vsel %vm110, %v286, 0
  %v330 = vsel %vm110, %v287, 0
  %v333 = vsel %vm110, %v288, 0
  %v336 = vsel %vm110, %v289, 0
  %v339 = vsel %vm110, %v290, 0
  %v342 = vsel %vm110, %v291, 0
  %v345 = vsel %vm110, %v292, 0
  %v348 = vsel %vm110, %v293, 0
  %v351 = vsel %vm110, %v294, 0
  %v354 = vsel %vm110, %v295, 0
  %v357 = vsel %vm110, %v296, 0
  %v360 = vsel %vm110, %v297, 0
  %v363 = vsel %vm110, %v298, 0
  %v366 = vsel %vm110, %v299, 0
  %v369 = vsel %vm110, %v300, 0
  %v372 = vsel %vm110, %v301, 0
  %v375 = vsel %vm110, %v302, 0
  %v378 = vsel %vm110, %v303, 0
  %v381 = vsel %vm110, %v304, 0
  %v384 = vsel %vm110, %v305, 0
  %v387 = vsel %vm110, %v306, 0
  %v390 = vsel %vm110, %v307, 0
  %v393 = vsel %vm110, %v308, 0
  %v396 = vsel %vm110, %v309, 0
  %v399 = vsel %vm110, %v310, 0
  %v402 = vsel %vm110, %v311, 0
  %v405 = vsel %vm110, %v312, 0
  %v408 = vsel %vm110, %v313, 0
  %410 = vmatpush.msra.mxu0 0.0
  %411 = vmatpush.msra.mxu0 0.0
  %412 = vmatpush.msra.mxu0 0.0
  %413 = vmatpush.msra.mxu0 0.0
  %414 = vmatpush.msra.mxu0 0.0
  %415 = vmatpush.msra.mxu0 0.0
  %416 = vmatpush.msra.mxu0 0.0
  %417 = vmatpush.msra.mxu0 0.0
  %418 = vmatpush.msra.mxu0 0.0
  %419 = vmatpush.msra.mxu0 0.0
  %420 = vmatpush.msra.mxu0 0.0
  %421 = vmatpush.msra.mxu0 0.0
  %422 = vmatpush.msra.mxu0 0.0
  %423 = vmatpush.msra.mxu0 0.0
  %424 = vmatpush.msra.mxu0 %v188
  %425 = vmatpush.msra.mxu0 %v54
  %426 = vmatmul.f32.gmra.mxu0 %v315
  %v427 = vpop.f32.mrf.mxu0
  %v428 = vadd.f32 0.0, %v427
  %429 = vmatmul.f32.gmra.mxu0 %v318
  %v430 = vpop.f32.mrf.mxu0
  %v431 = vadd.f32 0.0, %v430
  %432 = vmatmul.f32.gmra.mxu0 %v321
  %v433 = vpop.f32.mrf.mxu0
  %v434 = vadd.f32 0.0, %v433
  %435 = vmatmul.f32.gmra.mxu0 %v324
  %v436 = vpop.f32.mrf.mxu0
  %v437 = vadd.f32 0.0, %v436
  %438 = vmatmul.f32.gmra.mxu0 %v327
  %v439 = vpop.f32.mrf.mxu0
  %v440 = vadd.f32 0.0, %v439
  %441 = vmatmul.f32.gmra.mxu0 %v330
  %v442 = vpop.f32.mrf.mxu0
  %v443 = vadd.f32 0.0, %v442
  %444 = vmatmul.f32.gmra.mxu0 %v333
  %v445 = vpop.f32.mrf.mxu0
  %v446 = vadd.f32 0.0, %v445
  %447 = vmatmul.f32.gmra.mxu0 %v336
  %v448 = vpop.f32.mrf.mxu0
  %v449 = vadd.f32 0.0, %v448
  %450 = vmatmul.f32.gmra.mxu0 %v339
  %v451 = vpop.f32.mrf.mxu0
  %v452 = vadd.f32 0.0, %v451
  %453 = vmatmul.f32.gmra.mxu0 %v342
  %v454 = vpop.f32.mrf.mxu0
  %v455 = vadd.f32 0.0, %v454
  %456 = vmatmul.f32.gmra.mxu0 %v345
  %v457 = vpop.f32.mrf.mxu0
  %v458 = vadd.f32 0.0, %v457
  %459 = vmatmul.f32.gmra.mxu0 %v348
  %v460 = vpop.f32.mrf.mxu0
  %v461 = vadd.f32 0.0, %v460
  %462 = vmatmul.f32.gmra.mxu0 %v351
  %v463 = vpop.f32.mrf.mxu0
  %v464 = vadd.f32 0.0, %v463
  %465 = vmatmul.f32.gmra.mxu0 %v354
  %v466 = vpop.f32.mrf.mxu0
  %v467 = vadd.f32 0.0, %v466
  %468 = vmatmul.f32.gmra.mxu0 %v357
  %v469 = vpop.f32.mrf.mxu0
  %v470 = vadd.f32 0.0, %v469
  %471 = vmatmul.f32.gmra.mxu0 %v360
  %v472 = vpop.f32.mrf.mxu0
  %v473 = vadd.f32 0.0, %v472
  %474 = vmatmul.f32.gmra.mxu0 %v363
  %v475 = vpop.f32.mrf.mxu0
  %v476 = vadd.f32 0.0, %v475
  %477 = vmatmul.f32.gmra.mxu0 %v366
  %v478 = vpop.f32.mrf.mxu0
  %v479 = vadd.f32 0.0, %v478
  %480 = vmatmul.f32.gmra.mxu0 %v369
  %v481 = vpop.f32.mrf.mxu0
  %v482 = vadd.f32 0.0, %v481
  %483 = vmatmul.f32.gmra.mxu0 %v372
  %v484 = vpop.f32.mrf.mxu0
  %v485 = vadd.f32 0.0, %v484
  %486 = vmatmul.f32.gmra.mxu0 %v375
  %v487 = vpop.f32.mrf.mxu0
  %v488 = vadd.f32 0.0, %v487
  %489 = vmatmul.f32.gmra.mxu0 %v378
  %v490 = vpop.f32.mrf.mxu0
  %v491 = vadd.f32 0.0, %v490
  %492 = vmatmul.f32.gmra.mxu0 %v381
  %v493 = vpop.f32.mrf.mxu0
  %v494 = vadd.f32 0.0, %v493
  %495 = vmatmul.f32.gmra.mxu0 %v384
  %v496 = vpop.f32.mrf.mxu0
  %v497 = vadd.f32 0.0, %v496
  %498 = vmatmul.f32.gmra.mxu0 %v387
  %v499 = vpop.f32.mrf.mxu0
  %v500 = vadd.f32 0.0, %v499
  %501 = vmatmul.f32.gmra.mxu0 %v390
  %v502 = vpop.f32.mrf.mxu0
  %v503 = vadd.f32 0.0, %v502
  %504 = vmatmul.f32.gmra.mxu0 %v393
  %v505 = vpop.f32.mrf.mxu0
  %v506 = vadd.f32 0.0, %v505
  %507 = vmatmul.f32.gmra.mxu0 %v396
  %v508 = vpop.f32.mrf.mxu0
  %v509 = vadd.f32 0.0, %v508
  %510 = vmatmul.f32.gmra.mxu0 %v399
  %v511 = vpop.f32.mrf.mxu0
  %v512 = vadd.f32 0.0, %v511
  %513 = vmatmul.f32.gmra.mxu0 %v402
  %v514 = vpop.f32.mrf.mxu0
  %v515 = vadd.f32 0.0, %v514
  %516 = vmatmul.f32.gmra.mxu0 %v405
  %v517 = vpop.f32.mrf.mxu0
  %v518 = vadd.f32 0.0, %v517
  %519 = vmatmul.f32.gmra.mxu0 %v408
  %v520 = vpop.f32.mrf.mxu0
  %v521 = vadd.f32 0.0, %v520
  %522 = vdwg.mxu0
  %vm530 = vcmask 1045504
  %v531 = vrot.slane %v226, 2
  %v532 = vrot.slane %v229, 2
  %v533 = vsel %vm530, %v531, %v532
  %v534 = vrot.slane %v232, 2
  %v535 = vsel %vm530, %v532, %v534
  %v536 = vrot.slane %v235, 2
  %v537 = vsel %vm530, %v534, %v536
  %v538 = vrot.slane %v238, 2
  %v539 = vsel %vm530, %v536, %v538
  %v540 = vrot.slane %v241, 2
  %v541 = vsel %vm530, %v538, %v540
  %v542 = vrot.slane %v244, 2
  %v543 = vsel %vm530, %v540, %v542
  %v551 = vmax.f32 %v208, %v533
  %v552 = vmax.f32 %v211, %v535
  %v553 = vmax.f32 %v214, %v537
  %v554 = vmax.f32 %v217, %v539
  %v555 = vmax.f32 %v220, %v541
  %v556 = vmax.f32 %v223, %v543
  %v557 = vmax.f32 %v226, %v542
  %vm564 = vcmask 1043456
  %v565 = vrot.slane %v244, 4
  %v566 = vrot.slane %v247, 4
  %v567 = vsel %vm564, %v565, %v566
  %v568 = vrot.slane %v250, 4
  %v569 = vsel %vm564, %v566, %v568
  %v570 = vrot.slane %v253, 4
  %v571 = vsel %vm564, %v568, %v570
  %v572 = vrot.slane %v256, 4
  %v573 = vsel %vm564, %v570, %v572
  %v574 = vrot.slane %v259, 4
  %v575 = vsel %vm564, %v572, %v574
  %v576 = vrot.slane %v262, 4
  %v577 = vsel %vm564, %v574, %v576
  %v585 = vmax.f32 %v551, %v567
  %v586 = vmax.f32 %v552, %v569
  %v587 = vmax.f32 %v553, %v571
  %v588 = vmax.f32 %v554, %v573
  %v589 = vmax.f32 %v555, %v575
  %v590 = vmax.f32 %v556, %v577
  %v591 = vmax.f32 %v557, %v576
  %v598 = vrot.slane %v262, 6
  %v599 = vrot.slane %v265, 6
  %v600 = vsel %vm186, %v598, %v599
  %v601 = vrot.slane %v268, 6
  %v602 = vsel %vm186, %v599, %v601
  %v603 = vrot.slane %v271, 6
  %v604 = vsel %vm186, %v601, %v603
  %v605 = vrot.slane %v274, 6
  %v606 = vsel %vm186, %v603, %v605
  %v607 = vrot.slane %v277, 6
  %v608 = vsel %vm186, %v605, %v607
  %v609 = vrot.slane %v280, 6
  %v610 = vsel %vm186, %v607, %v609
  %v618 = vmax.f32 %v585, %v600
  %v619 = vmax.f32 %v586, %v602
  %v620 = vmax.f32 %v587, %v604
  %v621 = vmax.f32 %v588, %v606
  %v622 = vmax.f32 %v589, %v608
  %v623 = vmax.f32 %v590, %v610
  %v624 = vmax.f32 %v591, %v609
  %v632 = vrot.slane %v446, 2
  %v633 = vrot.slane %v449, 2
  %v634 = vsel %vm530, %v632, %v633
  %v635 = vrot.slane %v452, 2
  %v636 = vsel %vm530, %v633, %v635
  %v637 = vrot.slane %v455, 2
  %v638 = vsel %vm530, %v635, %v637
  %v639 = vrot.slane %v458, 2
  %v640 = vsel %vm530, %v637, %v639
  %v641 = vrot.slane %v461, 2
  %v642 = vsel %vm530, %v639, %v641
  %v643 = vrot.slane %v464, 2
  %v644 = vsel %vm530, %v641, %v643
  %v652 = vmax.f32 %v428, %v634
  %v653 = vmax.f32 %v431, %v636
  %v654 = vmax.f32 %v434, %v638
  %v655 = vmax.f32 %v437, %v640
  %v656 = vmax.f32 %v440, %v642
  %v657 = vmax.f32 %v443, %v644
  %v658 = vmax.f32 %v446, %v643
  %v665 = vrot.slane %v464, 4
  %v666 = vrot.slane %v467, 4
  %v667 = vsel %vm564, %v665, %v666
  %v668 = vrot.slane %v470, 4
  %v669 = vsel %vm564, %v666, %v668
  %v670 = vrot.slane %v473, 4
  %v671 = vsel %vm564, %v668, %v670
  %v672 = vrot.slane %v476, 4
  %v673 = vsel %vm564, %v670, %v672
  %v674 = vrot.slane %v479, 4
  %v675 = vsel %vm564, %v672, %v674
  %v676 = vrot.slane %v482, 4
  %v677 = vsel %vm564, %v674, %v676
  %v685 = vmax.f32 %v652, %v667
  %v686 = vmax.f32 %v653, %v669
  %v687 = vmax.f32 %v654, %v671
  %v688 = vmax.f32 %v655, %v673
  %v689 = vmax.f32 %v656, %v675
  %v690 = vmax.f32 %v657, %v677
  %v691 = vmax.f32 %v658, %v676
  %v698 = vrot.slane %v482, 6
  %v699 = vrot.slane %v485, 6
  %v700 = vsel %vm186, %v698, %v699
  %v701 = vrot.slane %v488, 6
  %v702 = vsel %vm186, %v699, %v701
  %v703 = vrot.slane %v491, 6
  %v704 = vsel %vm186, %v701, %v703
  %v705 = vrot.slane %v494, 6
  %v706 = vsel %vm186, %v703, %v705
  %v707 = vrot.slane %v497, 6
  %v708 = vsel %vm186, %v705, %v707
  %v709 = vrot.slane %v500, 6
  %v710 = vsel %vm186, %v707, %v709
  %v718 = vmax.f32 %v685, %v700
  %v719 = vmax.f32 %v686, %v702
  %v720 = vmax.f32 %v687, %v704
  %v721 = vmax.f32 %v688, %v706
  %v722 = vmax.f32 %v689, %v708
  %v723 = vmax.f32 %v690, %v710
  %v724 = vmax.f32 %v691, %v709
  %v725 = vmax.f32 %v718, %v503
  %v726 = vmax.f32 %v719, %v506
  %v727 = vmax.f32 %v720, %v509
  %v728 = vmax.f32 %v721, %v512
  %v729 = vmax.f32 %v722, %v515
  %v730 = vmax.f32 %v723, %v518
  %v731 = vmax.f32 %v724, %v521
  %v732 = vadd.f32 %v618, %v725
  %v733 = vadd.f32 %v619, %v726
  %v734 = vadd.f32 %v620, %v727
  %v735 = vadd.f32 %v621, %v728
  %v736 = vadd.f32 %v622, %v729
  %v737 = vadd.f32 %v623, %v730
  %v738 = vadd.f32 %v624, %v731
  %v739 = vperm.slane %v84, 0
  %v740 = vadd.f32 %v732, %v739
  %v741 = vadd.f32 %v733, %v739
  %v742 = vadd.f32 %v734, %v739
  %v743 = vadd.f32 %v735, %v739
  %v744 = vadd.f32 %v736, %v739
  %v745 = vadd.f32 %v737, %v739
  %v746 = vadd.f32 %v738, %v739
  %vm747 = vcmask 130048
  %748 = vst.msk [vmem:[%s6] sm:$0xff] %vm747, %v740
  %749 = vst.msk [vmem:[%s6 + $0x8] sm:$0xff] %vm747, %v741
  %750 = vst.msk [vmem:[%s6 + $0x10] sm:$0xff] %vm747, %v742
  %751 = vst.msk [vmem:[%s6 + $0x18] sm:$0xff] %vm747, %v743
  %752 = vst.msk [vmem:[%s6 + $0x20] sm:$0xff] %vm747, %v744
  %753 = vst.msk [vmem:[%s6 + $0x28] sm:$0xff] %vm747, %v745
  %vm754 = vcmask 123904
  %755 = vst.msk [vmem:[%s6 + $0x30] sm:$0x3] %vm754, %v746
  // Predicated region
  $region26: #{simple_forward.1} parent=0 // pred_check
    _
  $region27: #{simple_forward.1} parent=0 // pred_check_branch
    %757 = sbr.rel (0) target = $region29
  $region28: #{simple_forward.1} parent=0 // pred_region
    _
  $region29: #{simple_forward.1} parent=0 // pred_fallthru
    _
  // Predicated region
  $region30: #{simple_forward.1} parent=0 // pred_check
    _
  $region31: #{simple_forward.1} parent=0 // pred_check_branch
    %759 = sbr.rel (0) target = $region33
  $region32: #{simple_forward.1} parent=0 // pred_region
    _
  $region33: #{simple_forward.1} parent=0 // pred_fallthru
    _

</llo_original>
